<compile_context>
chip_gen: v7x
topology: tpu7x:2x2x1
jax: 0.10.0
libtpu: 0.0.40
codegen_flags: <defaults>
</compile_context>

<pallas_src>
import functools

import jax
import jax.numpy as jnp
from jax.experimental import pallas as pl
from jax.experimental.pallas import tpu as pltpu


def _mps_kernel(x_ref, eps_ref, w2_ref, val_ref, idx_ref, best_val, best_idx,
                *, n_total, tiles_per_split, needs_mask):
    k = pl.program_id(1)

    @pl.when(k == 0)
    def _():
        best_val[...] = jnp.full_like(best_val, -jnp.inf)
        best_idx[...] = jnp.zeros_like(best_idx)

    x = x_ref[...]                                     # [TN, d] (native dtype)
    tn = x.shape[0]
    # Global column index of the first candidate in this tile (unclamped; OOB
    # duplicate tiles produced by index-map clamping are fully masked below).
    col0 = (pl.program_id(0) * tiles_per_split + k) * tn

    # Fused posterior head: one skinny MXU matmul -> [mean_pre, std_pre].
    ms = jnp.dot(x, w2_ref[...], preferred_element_type=jnp.float32)   # [TN, 2]
    ms_t = ms.T                                        # [2, TN] small relayout
    mean = ms_t[0:1, :]                                # [1, TN]
    std = jax.nn.softplus(ms_t[1:2, :])                # [1, TN], stable (EUP)

    eps = eps_ref[...].astype(jnp.float32)             # [S, TN]
    obj = mean + std * eps                             # rsample + identity obj

    s = obj.shape[0]
    iota = jax.lax.broadcasted_iota(jnp.int32, (s, tn), 1)   # [S, TN]
    if needs_mask:                                     # trace-time constant
        obj = jnp.where((iota + col0) < n_total, obj, -jnp.inf)

    # Tile-local argmax, first occurrence on ties (matches torch.argmax).
    mx = jnp.max(obj, axis=-1, keepdims=True)          # [S, 1]
    cand = jnp.where(obj == mx, iota, tn)
    loc = jnp.min(cand, axis=-1, keepdims=True)        # [S, 1] local index
    gidx = loc + col0                                  # [S, 1] global index

    # Strict '>' keeps the earliest tile on ties (global first occurrence).
    upd = mx > best_val[...]
    best_val[...] = jnp.where(upd, mx, best_val[...])
    best_idx[...] = jnp.where(upd, gidx, best_idx[...])

    @pl.when(k == pl.num_programs(1) - 1)
    def _():
        val_ref[...] = best_val[...]
        idx_ref[...] = best_idx[...]


def _default_num_splits():
    """Use both TensorCores on v7x-class chips; single split elsewhere."""
    try:
        kind = jax.devices()[0].device_kind.lower()
        if "v7" in kind or "7x" in kind:
            return 2
    except Exception:
        pass
    return 1


def max_posterior_sampling(X, eps, w2, *, tn=16384, num_splits=None,
                           vmem_budget_bytes=28 * 1024 * 1024):
    """X: [N, d]; eps: [num_samples, N]; w2 = concat([w_mu, w_sigma], 1): [d, 2].
    Returns X_next: [num_samples, d] (rows of X with max posterior rsample)."""
    N, d = X.shape
    S = eps.shape[0]
    assert eps.shape[1] == N

    # --- VMEM-aware tile sizing (last dim of an X block pads to 128 lanes). ---
    rup = lambda a, m: ((a + m - 1) // m) * m
    bytes_per_col = (rup(d, 128) * X.dtype.itemsize            # X tile, lane-padded
                     + rup(S, 8) * eps.dtype.itemsize)         # eps tile, sublane-padded
    tn_cap = max(128, (vmem_budget_bytes // (2 * bytes_per_col)) // 128 * 128)
    tn = min(tn, tn_cap)
    if tn >= N:
        tn = N                                   # single tile spans the full axis
    else:
        tn = max(128, (tn // 128) * 128)         # lane-aligned streaming tile

    n_blocks = pl.cdiv(N, tn)
    if num_splits is None:
        num_splits = _default_num_splits()
    num_splits = int(max(1, min(num_splits, n_blocks)))
    tiles_per_split = pl.cdiv(n_blocks, num_splits)
    needs_mask = (num_splits * tiles_per_split * tn) != N

    # Contiguous block ranges per split (split 0 owns the lowest indices so the
    # merge tie-break below preserves global first occurrence).  Block indices
    # are clamped so fully-OOB trips re-read the last valid block (then masked).
    def x_map(c, k):
        return (jnp.minimum(c * tiles_per_split + k, n_blocks - 1), 0)

    def eps_map(c, k):
        return (0, jnp.minimum(c * tiles_per_split + k, n_blocks - 1))

    kernel = functools.partial(_mps_kernel, n_total=N,
                               tiles_per_split=tiles_per_split,
                               needs_mask=needs_mask)

    val, idx = pl.pallas_call(
        kernel,
        out_shape=(jax.ShapeDtypeStruct((num_splits, S, 1), jnp.float32),
                   jax.ShapeDtypeStruct((num_splits, S, 1), jnp.int32)),
        grid_spec=pltpu.PrefetchScalarGridSpec(
            num_scalar_prefetch=0,
            grid=(num_splits, tiles_per_split),
            in_specs=[
                pl.BlockSpec((tn, d), x_map),               # X tile (streamed)
                pl.BlockSpec((S, tn), eps_map),             # eps tile (streamed)
                pl.BlockSpec((d, 2), lambda c, k: (0, 0)),  # fused weights (resident)
            ],
            out_specs=(
                pl.BlockSpec((None, S, 1), lambda c, k: (c, 0, 0)),  # per-split max
                pl.BlockSpec((None, S, 1), lambda c, k: (c, 0, 0)),  # per-split argmax
            ),
            scratch_shapes=[
                pltpu.VMEM((S, 1), jnp.float32),   # running max
                pltpu.VMEM((S, 1), jnp.int32),     # running argmax (global idx)
            ],
        ),
        compiler_params=pltpu.CompilerParams(
            dimension_semantics=("parallel", "arbitrary"),
            vmem_limit_bytes=48 * 1024 * 1024,
        ),
    )(X, eps, w2)

    # Merge per-split partial results.  jnp.argmax returns the first maximum,
    # so the lower split (lower global indices) wins ties — same semantics as
    # torch.argmax first-occurrence.
    v = val[:, :, 0]                                    # [C, S]
    ix = idx[:, :, 0]                                   # [C, S]
    best_c = jnp.argmax(v, axis=0)                      # [S]
    idcs = jnp.take_along_axis(ix, best_c[None, :], axis=0)[0]   # [S]
    return X[idcs, :]                                   # trivial wrapper gather


def _reference(X, eps, w_mu, w_sigma):
    """Pure-JAX reference mirroring the PyTorch forward semantics."""
    mean = X @ w_mu                                      # [N, 1]
    std = jax.nn.softplus(X @ w_sigma)                   # [N, 1]
    samples = mean.T + std.T * eps                       # [S, N] (obj)
    idcs = jnp.argmax(samples, axis=-1)                  # [S]
    return X[idcs, :]                                    # [S, d]


# TODO(synk): the constrained branch (data-dependent early return of "min
# violators") and replacement=False (topk + _flip_sub_unique) have no clean
# static-shape Pallas equivalent; only the default forward path is implemented.

if __name__ == "__main__":
    key = jax.random.PRNGKey(0)
    k_x, k_eps, k_mu, k_sig = jax.random.split(key, 4)

    N, d, S = 384, 32, 8          # S multiple of 8 -> full sublane utilization
    X = jax.random.uniform(k_x, (N, d), dtype=jnp.float32)
    eps = jax.random.normal(k_eps, (S, N), dtype=jnp.float32)
    w_mu = jax.random.normal(k_mu, (d, 1), dtype=jnp.float32) * 0.3
    w_sigma = jax.random.normal(k_sig, (d, 1), dtype=jnp.float32) * 0.1
    w2 = jnp.concatenate([w_mu, w_sigma], axis=1)        # fused [d, 2]

    ref = _reference(X, eps, w_mu, w_sigma)

    # 1) Default path (large tile -> single block at this N), auto split count.
    out = jax.block_until_ready(max_posterior_sampling(X, eps, w2))
    assert out.shape == (S, d), out.shape
    assert jnp.allclose(out, ref, atol=1e-5, rtol=1e-5), "mismatch (default)"

    # 2) Forced streaming + two-way split: exercises cross-tile running max,
    #    index-map clamping and cross-split merge (correct even on 1 TC chips).
    out2 = jax.block_until_ready(
        max_posterior_sampling(X, eps, w2, tn=128, num_splits=2))
    assert jnp.allclose(out2, ref, atol=1e-5, rtol=1e-5), "mismatch (split)"

    # 3) Ragged N (last tile padded + masked) with split.
    N2 = 200
    X2 = jax.random.uniform(k_x, (N2, d), dtype=jnp.float32)
    eps2 = jax.random.normal(k_eps, (S, N2), dtype=jnp.float32)
    ref2 = _reference(X2, eps2, w_mu, w_sigma)
    out3 = jax.block_until_ready(
        max_posterior_sampling(X2, eps2, w2, tn=128, num_splits=2))
    assert jnp.allclose(out3, ref2, atol=1e-5, rtol=1e-5), "mismatch (ragged)"

    print("KERNEL_OK")
</pallas_src>

<mosaic_0001>
module attributes {stable_mosaic.version = 11 : i64} {
  func.func @_mps_kernel(%arg0: i32, %arg1: i32, %arg2: memref<384x32xf32, #tpu.memory_space<vmem>>, %arg3: memref<8x384xf32, #tpu.memory_space<vmem>>, %arg4: memref<32x2xf32, #tpu.memory_space<vmem>>, %arg5: memref<1x8x1xf32, #tpu.memory_space<vmem>>, %arg6: memref<1x8x1xi32, #tpu.memory_space<vmem>>, %arg7: memref<8x1xf32, #tpu.memory_space<vmem>>, %arg8: memref<8x1xi32, #tpu.memory_space<vmem>>) attributes {dimension_semantics = [#tpu.dimension_semantics<parallel>, #tpu.dimension_semantics<arbitrary>], iteration_bounds = array<i64: 1, 1>, scalar_prefetch = 0 : i64, scratch_operands = 2 : i64, tpu.core_type = #tpu.core_type<tc>, window_params = [{transform_indices = @transform_0, window_bounds = array<i64: 384, 32>}, {transform_indices = @transform_1, window_bounds = array<i64: 8, 384>}, {pipeline_mode = #tpu.pipeline_mode<synchronous>, transform_indices = @transform_2, window_bounds = array<i64: 32, 2>}, {transform_indices = @transform_3, window_bounds = array<i64: 1, 8, 1>}, {transform_indices = @transform_4, window_bounds = array<i64: 1, 8, 1>}]} {
    %c0_i32 = arith.constant 0 : i32
    %0 = arith.cmpi eq, %arg1, %c0_i32 : i32
    %1 = arith.extui %0 : i1 to i32
    %c0_i32_0 = arith.constant 0 : i32
    %2 = arith.cmpi ne, %1, %c0_i32_0 : i32
    scf.if %2 {
      %cst_23 = arith.constant 0xFF800000 : f32
      %53 = vector.broadcast %cst_23 : f32 to vector<8x1xf32>
      %c0_24 = arith.constant 0 : index
      %c0_25 = arith.constant 0 : index
      %54 = vector.load %arg7[%c0_24, %c0_25] : memref<8x1xf32, #tpu.memory_space<vmem>>, vector<8x1xf32>
      tpu.vector_store %arg7[%c0_24, %c0_25], %53 {strides = array<i32>} : memref<8x1xf32, #tpu.memory_space<vmem>>, vector<8x1xf32>,
      %c0_i32_26 = arith.constant 0 : i32
      %55 = vector.broadcast %c0_i32_26 : i32 to vector<8x1xi32>
      %c0_27 = arith.constant 0 : index
      %c0_28 = arith.constant 0 : index
      %56 = vector.load %arg8[%c0_27, %c0_28] : memref<8x1xi32, #tpu.memory_space<vmem>>, vector<8x1xi32>
      tpu.vector_store %arg8[%c0_27, %c0_28], %55 {strides = array<i32>} : memref<8x1xi32, #tpu.memory_space<vmem>>, vector<8x1xi32>,
    } else {
    }
    %c0 = arith.constant 0 : index
    %c0_1 = arith.constant 0 : index
    %3 = vector.load %arg2[%c0, %c0_1] : memref<384x32xf32, #tpu.memory_space<vmem>>, vector<384x32xf32>
    %c1_i32 = arith.constant 1 : i32
    %4 = arith.muli %arg0, %c1_i32 : i32
    %5 = arith.addi %4, %arg1 : i32
    %c384_i32 = arith.constant 384 : i32
    %6 = arith.muli %5, %c384_i32 : i32
    %c0_2 = arith.constant 0 : index
    %c0_3 = arith.constant 0 : index
    %7 = vector.load %arg4[%c0_2, %c0_3] : memref<32x2xf32, #tpu.memory_space<vmem>>, vector<32x2xf32>
    %cst = arith.constant dense<0.000000e+00> : vector<384x2xf32>
    %8 = tpu.matmul %3, %7, %cst {dimension_numbers = #tpu.dot_dimension_numbers<[1], [0], [0], [1], [0, 0, 1, 1], [], []>} : vector<384x32xf32>, vector<32x2xf32>, vector<384x2xf32> -> vector<384x2xf32>
    %9 = tpu.transpose %8, [1, 0] : vector<384x2xf32> -> vector<2x384xf32>
    %10 = vector.extract_strided_slice %9 {offsets = [0, 0], sizes = [1, 384], strides = [1, 1]} : vector<2x384xf32> to vector<1x384xf32>
    %11 = vector.extract_strided_slice %9 {offsets = [1, 0], sizes = [1, 384], strides = [1, 1]} : vector<2x384xf32> to vector<1x384xf32>
    %cst_4 = arith.constant 0.000000e+00 : f32
    %12 = vector.broadcast %cst_4 : f32 to vector<1x384xf32>
    %13 = arith.maximumf %11, %12 : vector<1x384xf32>
    %14 = vector.broadcast %cst_4 : f32 to vector<1x384xf32>
    %15 = arith.subf %11, %14 : vector<1x384xf32>
    %16 = arith.cmpf one, %15, %15 : vector<1x384xf32>
    %17 = vector.broadcast %cst_4 : f32 to vector<1x384xf32>
    %18 = arith.addf %11, %17 : vector<1x384xf32>
    %19 = math.absf %15 : vector<1x384xf32>
    %cst_5 = arith.constant 0.000000e+00 : f32
    %20 = vector.broadcast %cst_5 : f32 to vector<1x384xf32>
    %21 = arith.subf %20, %19 : vector<1x384xf32>
    %22 = math.exp %21 : vector<1x384xf32>
    %23 = math.log1p %22 : vector<1x384xf32>
    %24 = arith.addf %13, %23 : vector<1x384xf32>
    %25 = arith.select %16, %18, %24 : vector<1x384xi1>, vector<1x384xf32>
    %c0_6 = arith.constant 0 : index
    %c0_7 = arith.constant 0 : index
    %26 = vector.load %arg3[%c0_6, %c0_7] : memref<8x384xf32, #tpu.memory_space<vmem>>, vector<8x384xf32>
    %27 = vector.broadcast %25 : vector<1x384xf32> to vector<8x384xf32>
    %28 = arith.mulf %27, %26 : vector<8x384xf32>
    %29 = vector.broadcast %10 : vector<1x384xf32> to vector<8x384xf32>
    %30 = arith.addf %29, %28 : vector<8x384xf32>
    %31 = tpu.iota {dimensions = array<i32: 1>} : vector<8x384xi32>
    %cst_8 = arith.constant dense<0xFF800000> : vector<8xf32>
    %32 = vector.multi_reduction <maximumf>, %30, %cst_8 [1] : vector<8x384xf32> to vector<8xf32>
    %33 = vector.shape_cast %32 : vector<8xf32> to vector<8x1xf32>
    %34 = vector.broadcast %33 : vector<8x1xf32> to vector<8x384xf32>
    %35 = arith.cmpf oeq, %30, %34 : vector<8x384xf32>
    %c384_i32_9 = arith.constant 384 : i32
    %36 = vector.broadcast %c384_i32_9 : i32 to vector<8x384xi32>
    %37 = arith.select %35, %31, %36 : vector<8x384xi1>, vector<8x384xi32>
    %cst_10 = arith.constant dense<2147483647> : vector<8xi32>
    %38 = vector.multi_reduction <minsi>, %37, %cst_10 [1] : vector<8x384xi32> to vector<8xi32>
    %39 = vector.shape_cast %38 : vector<8xi32> to vector<8x1xi32>
    %40 = vector.broadcast %6 : i32 to vector<8x1xi32>
    %41 = arith.addi %39, %40 : vector<8x1xi32>
    %c0_11 = arith.constant 0 : index
    %c0_12 = arith.constant 0 : index
    %42 = vector.load %arg7[%c0_11, %c0_12] : memref<8x1xf32, #tpu.memory_space<vmem>>, vector<8x1xf32>
    %43 = arith.cmpf ogt, %33, %42 : vector<8x1xf32>
    %c0_13 = arith.constant 0 : index
    %c0_14 = arith.constant 0 : index
    %44 = vector.load %arg7[%c0_13, %c0_14] : memref<8x1xf32, #tpu.memory_space<vmem>>, vector<8x1xf32>
    %45 = arith.select %43, %33, %44 : vector<8x1xi1>, vector<8x1xf32>
    %c0_15 = arith.constant 0 : index
    %c0_16 = arith.constant 0 : index
    %46 = vector.load %arg7[%c0_15, %c0_16] : memref<8x1xf32, #tpu.memory_space<vmem>>, vector<8x1xf32>
    tpu.vector_store %arg7[%c0_15, %c0_16], %45 {strides = array<i32>} : memref<8x1xf32, #tpu.memory_space<vmem>>, vector<8x1xf32>,
    %c0_17 = arith.constant 0 : index
    %c0_18 = arith.constant 0 : index
    %47 = vector.load %arg8[%c0_17, %c0_18] : memref<8x1xi32, #tpu.memory_space<vmem>>, vector<8x1xi32>
    %48 = arith.select %43, %41, %47 : vector<8x1xi1>, vector<8x1xi32>
    %c0_19 = arith.constant 0 : index
    %c0_20 = arith.constant 0 : index
    %49 = vector.load %arg8[%c0_19, %c0_20] : memref<8x1xi32, #tpu.memory_space<vmem>>, vector<8x1xi32>
    tpu.vector_store %arg8[%c0_19, %c0_20], %48 {strides = array<i32>} : memref<8x1xi32, #tpu.memory_space<vmem>>, vector<8x1xi32>,
    %c0_i32_21 = arith.constant 0 : i32
    %50 = arith.cmpi eq, %arg1, %c0_i32_21 : i32
    %51 = arith.extui %50 : i1 to i32
    %c0_i32_22 = arith.constant 0 : i32
    %52 = arith.cmpi ne, %51, %c0_i32_22 : i32
    scf.if %52 {
      %c0_23 = arith.constant 0 : index
      %c0_24 = arith.constant 0 : index
      %53 = vector.load %arg7[%c0_23, %c0_24] : memref<8x1xf32, #tpu.memory_space<vmem>>, vector<8x1xf32>
      %c0_25 = arith.constant 0 : index
      %c0_26 = arith.constant 0 : index
      %c0_27 = arith.constant 0 : index
      %54 = vector.load %arg5[%c0_25, %c0_26, %c0_27] : memref<1x8x1xf32, #tpu.memory_space<vmem>>, vector<1x8x1xf32>
      %55 = vector.shape_cast %54 : vector<1x8x1xf32> to vector<8x1xf32>
      %56 = vector.shape_cast %53 : vector<8x1xf32> to vector<1x8x1xf32>
      tpu.vector_store %arg5[%c0_25, %c0_26, %c0_27], %56 {strides = array<i32>} : memref<1x8x1xf32, #tpu.memory_space<vmem>>, vector<1x8x1xf32>,
      %c0_28 = arith.constant 0 : index
      %c0_29 = arith.constant 0 : index
      %57 = vector.load %arg8[%c0_28, %c0_29] : memref<8x1xi32, #tpu.memory_space<vmem>>, vector<8x1xi32>
      %c0_30 = arith.constant 0 : index
      %c0_31 = arith.constant 0 : index
      %c0_32 = arith.constant 0 : index
      %58 = vector.load %arg6[%c0_30, %c0_31, %c0_32] : memref<1x8x1xi32, #tpu.memory_space<vmem>>, vector<1x8x1xi32>
      %59 = vector.shape_cast %58 : vector<1x8x1xi32> to vector<8x1xi32>
      %60 = vector.shape_cast %57 : vector<8x1xi32> to vector<1x8x1xi32>
      tpu.vector_store %arg6[%c0_30, %c0_31, %c0_32], %60 {strides = array<i32>} : memref<1x8x1xi32, #tpu.memory_space<vmem>>, vector<1x8x1xi32>,
    } else {
    }
    return
  }
  func.func @transform_0(%arg0: i32, %arg1: i32) -> (i32, i32) {
    %c1_i32 = arith.constant 1 : i32
    %0 = arith.muli %arg0, %c1_i32 : i32
    %1 = arith.addi %0, %arg1 : i32
    %c0_i32 = arith.constant 0 : i32
    %2 = arith.minsi %1, %c0_i32 : i32
    %c0_i32_0 = arith.constant 0 : i32
    %c0_i32_1 = arith.constant 0 : i32
    return %2, %c0_i32_0 : i32, i32
  }
  func.func @transform_1(%arg0: i32, %arg1: i32) -> (i32, i32) {
    %c1_i32 = arith.constant 1 : i32
    %0 = arith.muli %arg0, %c1_i32 : i32
    %1 = arith.addi %0, %arg1 : i32
    %c0_i32 = arith.constant 0 : i32
    %2 = arith.minsi %1, %c0_i32 : i32
    %c0_i32_0 = arith.constant 0 : i32
    %c0_i32_1 = arith.constant 0 : i32
    return %c0_i32_0, %2 : i32, i32
  }
  func.func @transform_2(%arg0: i32, %arg1: i32) -> (i32, i32) {
    %c0_i32 = arith.constant 0 : i32
    %c0_i32_0 = arith.constant 0 : i32
    %c0_i32_1 = arith.constant 0 : i32
    return %c0_i32, %c0_i32_0 : i32, i32
  }
  func.func @transform_3(%arg0: i32, %arg1: i32) -> (i32, i32, i32) {
    %c0_i32 = arith.constant 0 : i32
    %c0_i32_0 = arith.constant 0 : i32
    %c0_i32_1 = arith.constant 0 : i32
    return %arg0, %c0_i32, %c0_i32_0 : i32, i32, i32
  }
  func.func @transform_4(%arg0: i32, %arg1: i32) -> (i32, i32, i32) {
    %c0_i32 = arith.constant 0 : i32
    %c0_i32_0 = arith.constant 0 : i32
    %c0_i32_1 = arith.constant 0 : i32
    return %arg0, %c0_i32, %c0_i32_0 : i32, i32, i32
  }
}

</mosaic_0001>

<llo_original>
// kernel: tpu_custom_call.1
$region0: #{tpu_custom_call.1}
  #allocation0 [shape = 'u32[]', space=smem, size = 0x4, offset = 0x4, fixed_abs, tag = 'smem constant byte address 0x4 - core index']
  #allocation1 [shape = 'u32[144,128]{1,0:T(1,128)}', space=vmem, size = 0x12000, scoped, tag = 'internal scratch']
  #allocation2 [shape = 'f32[8,1]{1,0:T(8,128)}', space=vmem, size = 0x1000, scoped, tag = 'scratch operand']
  #allocation3 [shape = 's32[8,1]{1,0:T(8,128)}', space=vmem, size = 0x1000, scoped, tag = 'scratch operand']
  %s0 = inlined_call_operand.vmem [shape: f32[384,32], index: 0, kind: input, shape index: {}]
  %s1 = inlined_call_operand.vmem [shape: f32[8,384], index: 1, kind: input, shape index: {}]
  %s2 = inlined_call_operand.vmem [shape: f32[32,2], index: 2, kind: input, shape index: {}]
  %s3 = inlined_call_operand.vmem [shape: f32[1,8,1], index: 3, kind: output, shape index: {0}]
  %s4 = inlined_call_operand.vmem [shape: s32[1,8,1], index: 4, kind: output, shape index: {1}]
  %5 = xla_tuple %s3, %s4
  %s6 = sld [smem:[#allocation0]]
  $region38: #{tpu_custom_call.1} parent=0
    _
  %s8 = ssub.s32 1, %s6
  %s9 = scalar_select 0, %s8, %s6
  // Predicated region
  $region2: #{tpu_custom_call.1} parent=0 // pred_check
    _
  $region3: #{tpu_custom_call.1} parent=0 // pred_check_branch
    %11 = sbr.rel (0) target = $region5
  $region4: #{tpu_custom_call.1} parent=0 // pred_region
    %s12 = sadd.s32 0, 0
    %p13 = scmp.lt.s32.totalorder %s12, 0
    %s14 = scalar_select %p13, %s12, 0
    %s15 = smul.u32 48, %s14
    %p16 = scmp.lt.s32.totalorder %s15, 47
    %s17 = scalar_select %p16, %s15, 47
    %s18 = smul.addr %s17, 8
    %s19 = scalar_lea.vmem %s0, %s18
    %s20 = sadd.s32 0, 0
    %p21 = scmp.lt.s32.totalorder %s20, 0
    %s22 = scalar_select %p21, %s20, 0
    %s23 = smul.u32 48, %s22
  $region5: #{tpu_custom_call.1} parent=0 // pred_fallthru
    _
  // Predicated region
  $region6: #{tpu_custom_call.1} parent=0 // pred_check
    _
  $region7: #{tpu_custom_call.1} parent=0 // pred_check_branch
    %25 = sbr.rel (0) target = $region9
  $region8: #{tpu_custom_call.1} parent=0 // pred_region
    %s26 = sadd.s32 0, 0
    %p27 = scmp.lt.s32.totalorder %s26, 0
    %s28 = scalar_select %p27, %s26, 0
    %s29 = smul.u32 3, %s28
    %p30 = scmp.lt.s32.totalorder %s29, 2
    %s31 = scalar_select %p30, %s29, 2
    %s32 = smul.addr %s31, 8
    %s33 = scalar_lea.vmem %s1, %s32
    %s34 = sadd.s32 0, 0
    %p35 = scmp.lt.s32.totalorder %s34, 0
    %s36 = scalar_select %p35, %s34, 0
    %s37 = smul.u32 3, %s36
  $region9: #{tpu_custom_call.1} parent=0 // pred_fallthru
    _
  // Predicated region
  $region10: #{tpu_custom_call.1} parent=0 // pred_check
    _
  $region11: #{tpu_custom_call.1} parent=0 // pred_check_branch
    %39 = sbr.rel (0) target = $region13
  $region12: #{tpu_custom_call.1} parent=0 // pred_region
    _
  $region13: #{tpu_custom_call.1} parent=0 // pred_fallthru
    _
  %s40 = sadd.s32 0, 0
  %p41 = scmp.lt.s32.totalorder %s40, 0
  %s42 = scalar_select %p41, %s40, 0
  %s43 = smul.u32 48, %s42
  %p44 = scmp.lt.s32.totalorder %s43, 47
  %s45 = scalar_select %p44, %s43, 47
  %s46 = smul.addr %s45, 8
  %s47 = scalar_lea.vmem %s0, %s46
  %s48 = sadd.s32 0, 0
  %p49 = scmp.lt.s32.totalorder %s48, 0
  %s50 = scalar_select %p49, %s48, 0
  %s51 = smul.u32 3, %s50
  %p52 = scmp.lt.s32.totalorder %s51, 2
  %s53 = scalar_select %p52, %s51, 2
  %s54 = smul.addr %s53, 8
  %s55 = scalar_lea.vmem %s1, %s54
  %s56 = sadd.s32 0, 0
  %p57 = scmp.lt.s32.totalorder %s56, 0
  %s58 = scalar_select %p57, %s56, 0
  %s59 = smul.u32 48, %s58
  %p60 = scmp.lt.s32.totalorder %s59, 47
  %s61 = scalar_select %p60, %s59, 47
  %s62 = smul.addr %s61, 8
  %s63 = scalar_lea.vmem %s0, %s62
  %s64 = sadd.s32 0, 0
  %p65 = scmp.lt.s32.totalorder %s64, 0
  %s66 = scalar_select %p65, %s64, 0
  %s67 = smul.u32 48, %s66
  %s68 = sadd.s32 0, 0
  %p69 = scmp.lt.s32.totalorder %s68, 0
  %s70 = scalar_select %p69, %s68, 0
  %s71 = smul.u32 3, %s70
  %p72 = scmp.lt.s32.totalorder %s71, 2
  %s73 = scalar_select %p72, %s71, 2
  %s74 = smul.addr %s73, 8
  %s75 = scalar_lea.vmem %s1, %s74
  %s76 = sadd.s32 0, 0
  %p77 = scmp.lt.s32.totalorder %s76, 0
  %s78 = scalar_select %p77, %s76, 0
  %s79 = smul.u32 3, %s78
  %p80 = scmp.eq.s32.totalorder 0, 0
  // Predicated region
  $region14: #{tpu_custom_call.1} parent=0 // pred_check
    %p81 = pneg %p80
  $region15: #{tpu_custom_call.1} parent=0 // pred_check_branch
    %83 = sbr.rel (%p81) target = $region17
  $region16: #{tpu_custom_call.1} parent=0 // pred_region
    %vm84 = vcmask 7168
    %85 = vst.msk [vmem:[#allocation2] sm:$0xff] %vm84, -inf
    %86 = vst.msk [vmem:[#allocation3] sm:$0xff] %vm84, 0
  $region17: #{tpu_custom_call.1} parent=0 // pred_fallthru
    _
  %v87 = vld [vmem:[%s63] sm:$0xff]
  %v88 = vld [vmem:[%s63 + $0x8] sm:$0xff]
  %v89 = vld [vmem:[%s63 + $0x10] sm:$0xff]
  %v90 = vld [vmem:[%s63 + $0x18] sm:$0xff]
  %v91 = vld [vmem:[%s63 + $0x20] sm:$0xff]
  %v92 = vld [vmem:[%s63 + $0x28] sm:$0xff]
  %v93 = vld [vmem:[%s63 + $0x30] sm:$0xff]
  %v94 = vld [vmem:[%s63 + $0x38] sm:$0xff]
  %v95 = vld [vmem:[%s63 + $0x40] sm:$0xff]
  %v96 = vld [vmem:[%s63 + $0x48] sm:$0xff]
  %v97 = vld [vmem:[%s63 + $0x50] sm:$0xff]
  %v98 = vld [vmem:[%s63 + $0x58] sm:$0xff]
  %v99 = vld [vmem:[%s63 + $0x60] sm:$0xff]
  %v100 = vld [vmem:[%s63 + $0x68] sm:$0xff]
  %v101 = vld [vmem:[%s63 + $0x70] sm:$0xff]
  %v102 = vld [vmem:[%s63 + $0x78] sm:$0xff]
  %v103 = vld [vmem:[%s63 + $0x80] sm:$0xff]
  %v104 = vld [vmem:[%s63 + $0x88] sm:$0xff]
  %v105 = vld [vmem:[%s63 + $0x90] sm:$0xff]
  %v106 = vld [vmem:[%s63 + $0x98] sm:$0xff]
  %v107 = vld [vmem:[%s63 + $0xa0] sm:$0xff]
  %v108 = vld [vmem:[%s63 + $0xa8] sm:$0xff]
  %v109 = vld [vmem:[%s63 + $0xb0] sm:$0xff]
  %v110 = vld [vmem:[%s63 + $0xb8] sm:$0xff]
  %v111 = vld [vmem:[%s63 + $0xc0] sm:$0xff]
  %v112 = vld [vmem:[%s63 + $0xc8] sm:$0xff]
  %v113 = vld [vmem:[%s63 + $0xd0] sm:$0xff]
  %v114 = vld [vmem:[%s63 + $0xd8] sm:$0xff]
  %v115 = vld [vmem:[%s63 + $0xe0] sm:$0xff]
  %v116 = vld [vmem:[%s63 + $0xe8] sm:$0xff]
  %v117 = vld [vmem:[%s63 + $0xf0] sm:$0xff]
  %v118 = vld [vmem:[%s63 + $0xf8] sm:$0xff]
  %v119 = vld [vmem:[%s63 + $0x100] sm:$0xff]
  %v120 = vld [vmem:[%s63 + $0x108] sm:$0xff]
  %v121 = vld [vmem:[%s63 + $0x110] sm:$0xff]
  %v122 = vld [vmem:[%s63 + $0x118] sm:$0xff]
  %v123 = vld [vmem:[%s63 + $0x120] sm:$0xff]
  %v124 = vld [vmem:[%s63 + $0x128] sm:$0xff]
  %v125 = vld [vmem:[%s63 + $0x130] sm:$0xff]
  %v126 = vld [vmem:[%s63 + $0x138] sm:$0xff]
  %v127 = vld [vmem:[%s63 + $0x140] sm:$0xff]
  %v128 = vld [vmem:[%s63 + $0x148] sm:$0xff]
  %v129 = vld [vmem:[%s63 + $0x150] sm:$0xff]
  %v130 = vld [vmem:[%s63 + $0x158] sm:$0xff]
  %v131 = vld [vmem:[%s63 + $0x160] sm:$0xff]
  %v132 = vld [vmem:[%s63 + $0x168] sm:$0xff]
  %v133 = vld [vmem:[%s63 + $0x170] sm:$0xff]
  %v134 = vld [vmem:[%s63 + $0x178] sm:$0xff]
  %s135 = sadd.s32 0, 0
  %s136 = smul.u32 %s135, 384
  %v137 = vld [vmem:[%s2] sm:$0xff]
  %v138 = vld [vmem:[%s2 + $0x8] sm:$0xff]
  %v139 = vld [vmem:[%s2 + $0x10] sm:$0xff]
  %v140 = vld [vmem:[%s2 + $0x18] sm:$0xff]
  %vm141 = vcmask 261120
  %v143 = vsel %vm141, %v87, 0
  %v146 = vsel %vm141, %v88, 0
  %v149 = vsel %vm141, %v89, 0
  %v152 = vsel %vm141, %v90, 0
  %v155 = vsel %vm141, %v91, 0
  %v158 = vsel %vm141, %v92, 0
  %v161 = vsel %vm141, %v93, 0
  %v164 = vsel %vm141, %v94, 0
  %v167 = vsel %vm141, %v95, 0
  %v170 = vsel %vm141, %v96, 0
  %v173 = vsel %vm141, %v97, 0
  %v176 = vsel %vm141, %v98, 0
  %v179 = vsel %vm141, %v99, 0
  %v182 = vsel %vm141, %v100, 0
  %v185 = vsel %vm141, %v101, 0
  %v188 = vsel %vm141, %v102, 0
  %v191 = vsel %vm141, %v103, 0
  %v194 = vsel %vm141, %v104, 0
  %v197 = vsel %vm141, %v105, 0
  %v200 = vsel %vm141, %v106, 0
  %v203 = vsel %vm141, %v107, 0
  %v206 = vsel %vm141, %v108, 0
  %v209 = vsel %vm141, %v109, 0
  %v212 = vsel %vm141, %v110, 0
  %v215 = vsel %vm141, %v111, 0
  %v218 = vsel %vm141, %v112, 0
  %v221 = vsel %vm141, %v113, 0
  %v224 = vsel %vm141, %v114, 0
  %v227 = vsel %vm141, %v115, 0
  %v230 = vsel %vm141, %v116, 0
  %v233 = vsel %vm141, %v117, 0
  %v236 = vsel %vm141, %v118, 0
  %v239 = vsel %vm141, %v119, 0
  %v242 = vsel %vm141, %v120, 0
  %v245 = vsel %vm141, %v121, 0
  %v248 = vsel %vm141, %v122, 0
  %v251 = vsel %vm141, %v123, 0
  %v254 = vsel %vm141, %v124, 0
  %v257 = vsel %vm141, %v125, 0
  %v260 = vsel %vm141, %v126, 0
  %v263 = vsel %vm141, %v127, 0
  %v266 = vsel %vm141, %v128, 0
  %v269 = vsel %vm141, %v129, 0
  %v272 = vsel %vm141, %v130, 0
  %v275 = vsel %vm141, %v131, 0
  %v278 = vsel %vm141, %v132, 0
  %v281 = vsel %vm141, %v133, 0
  %v284 = vsel %vm141, %v134, 0
  %286 = vmatprep.subr.mxu0 0.0
  %287 = vmatpush1.msra.mxu0 %v137
  %288 = vmatprep.subr.mxu0 0.0
  %289 = vmatpush1.msra.mxu0 %v138
  %290 = vmatprep.subr.mxu0 0.0
  %291 = vmatpush1.msra.mxu0 %v139
  %292 = vmatprep.subr.mxu0 0.0
  %293 = vmatpush1.msra.mxu0 %v140
  %294 = vmatprep.subr.mxu0 0.0
  %295 = vmatpush1.msra.mxu0 0.0
  %296 = vmatprep.subr.mxu0 0.0
  %297 = vmatpush1.msra.mxu0 0.0
  %298 = vmatprep.subr.mxu0 0.0
  %299 = vmatpush1.msra.mxu0 0.0
  %300 = vmatprep.subr.mxu0 0.0
  %301 = vmatpush1.msra.mxu0 0.0
  %302 = vmatprep.subr.mxu0 0.0
  %303 = vmatpush1.msra.mxu0 0.0
  %304 = vmatprep.subr.mxu0 0.0
  %305 = vmatpush1.msra.mxu0 0.0
  %306 = vmatprep.subr.mxu0 0.0
  %307 = vmatpush1.msra.mxu0 0.0
  %308 = vmatprep.subr.mxu0 0.0
  %309 = vmatpush1.msra.mxu0 0.0
  %310 = vmatprep.subr.mxu0 0.0
  %311 = vmatpush1.msra.mxu0 0.0
  %312 = vmatprep.subr.mxu0 0.0
  %313 = vmatpush1.msra.mxu0 0.0
  %314 = vmatprep.subr.mxu0 0.0
  %315 = vmatpush1.msra.mxu0 0.0
  %316 = vmatprep.subr.mxu0 0.0
  %317 = vmatpush1.msra.mxu0 0.0
  %318 = vmatprep.subr.mxu0 0.0
  %319 = vmatpush1.msra.mxu0 0.0
  %320 = vmatprep.subr.mxu0 0.0
  %321 = vmatpush1.msra.mxu0 0.0
  %322 = vmatprep.subr.mxu0 0.0
  %323 = vmatpush1.msra.mxu0 0.0
  %324 = vmatprep.subr.mxu0 0.0
  %325 = vmatpush1.msra.mxu0 0.0
  %326 = vmatprep.subr.mxu0 0.0
  %327 = vmatpush1.msra.mxu0 0.0
  %328 = vmatprep.subr.mxu0 0.0
  %329 = vmatpush1.msra.mxu0 0.0
  %330 = vmatprep.subr.mxu0 0.0
  %331 = vmatpush1.msra.mxu0 0.0
  %332 = vmatprep.subr.mxu0 0.0
  %333 = vmatpush1.msra.mxu0 0.0
  %334 = vmatprep.subr.mxu0 0.0
  %335 = vmatpush1.msra.mxu0 0.0
  %336 = vmatprep.subr.mxu0 0.0
  %337 = vmatpush1.msra.mxu0 0.0
  %338 = vmatprep.subr.mxu0 0.0
  %339 = vmatpush1.msra.mxu0 0.0
  %340 = vmatprep.subr.mxu0 0.0
  %341 = vmatpush1.msra.mxu0 0.0
  %342 = vmatprep.subr.mxu0 0.0
  %343 = vmatpush1.msra.mxu0 0.0
  %344 = vmatprep.subr.mxu0 0.0
  %345 = vmatpush1.msra.mxu0 0.0
  %346 = vmatprep.subr.mxu0 0.0
  %347 = vmatpush1.msra.mxu0 0.0
  %348 = vmatprep.subr.mxu0 0.0
  %349 = vmatpush1.msra.mxu0 0.0
  %350 = vmatprep.mubr.f32.mxu0 0.0
  %351 = vmatmul.mubr.f32.gmra.mrb[0].mxu0 %v143
  %v352 = vpop.f32.mrb[0].mxu0
  %v353 = vadd.f32 0.0, %v352
  %v354 = vpop.f32.mrb[0].mxu0
  %355 = vmatprep.mubr.f32.mxu0 0.0
  %356 = vmatmul.mubr.f32.gmra.mrb[0].mxu0 %v146
  %v357 = vpop.f32.mrb[0].mxu0
  %v358 = vadd.f32 0.0, %v357
  %v359 = vpop.f32.mrb[0].mxu0
  %360 = vmatprep.mubr.f32.mxu0 0.0
  %361 = vmatmul.mubr.f32.gmra.mrb[0].mxu0 %v149
  %v362 = vpop.f32.mrb[0].mxu0
  %v363 = vadd.f32 0.0, %v362
  %v364 = vpop.f32.mrb[0].mxu0
  %365 = vmatprep.mubr.f32.mxu0 0.0
  %366 = vmatmul.mubr.f32.gmra.mrb[0].mxu0 %v152
  %v367 = vpop.f32.mrb[0].mxu0
  %v368 = vadd.f32 0.0, %v367
  %v369 = vpop.f32.mrb[0].mxu0
  %370 = vmatprep.mubr.f32.mxu0 0.0
  %371 = vmatmul.mubr.f32.gmra.mrb[0].mxu0 %v155
  %v372 = vpop.f32.mrb[0].mxu0
  %v373 = vadd.f32 0.0, %v372
  %v374 = vpop.f32.mrb[0].mxu0
  %375 = vmatprep.mubr.f32.mxu0 0.0
  %376 = vmatmul.mubr.f32.gmra.mrb[0].mxu0 %v158
  %v377 = vpop.f32.mrb[0].mxu0
  %v378 = vadd.f32 0.0, %v377
  %v379 = vpop.f32.mrb[0].mxu0
  %380 = vmatprep.mubr.f32.mxu0 0.0
  %381 = vmatmul.mubr.f32.gmra.mrb[0].mxu0 %v161
  %v382 = vpop.f32.mrb[0].mxu0
  %v383 = vadd.f32 0.0, %v382
  %v384 = vpop.f32.mrb[0].mxu0
  %385 = vmatprep.mubr.f32.mxu0 0.0
  %386 = vmatmul.mubr.f32.gmra.mrb[0].mxu0 %v164
  %v387 = vpop.f32.mrb[0].mxu0
  %v388 = vadd.f32 0.0, %v387
  %v389 = vpop.f32.mrb[0].mxu0
  %390 = vmatprep.mubr.f32.mxu0 0.0
  %391 = vmatmul.mubr.f32.gmra.mrb[0].mxu0 %v167
  %v392 = vpop.f32.mrb[0].mxu0
  %v393 = vadd.f32 0.0, %v392
  %v394 = vpop.f32.mrb[0].mxu0
  %395 = vmatprep.mubr.f32.mxu0 0.0
  %396 = vmatmul.mubr.f32.gmra.mrb[0].mxu0 %v170
  %v397 = vpop.f32.mrb[0].mxu0
  %v398 = vadd.f32 0.0, %v397
  %v399 = vpop.f32.mrb[0].mxu0
  %400 = vmatprep.mubr.f32.mxu0 0.0
  %401 = vmatmul.mubr.f32.gmra.mrb[0].mxu0 %v173
  %v402 = vpop.f32.mrb[0].mxu0
  %v403 = vadd.f32 0.0, %v402
  %v404 = vpop.f32.mrb[0].mxu0
  %405 = vmatprep.mubr.f32.mxu0 0.0
  %406 = vmatmul.mubr.f32.gmra.mrb[0].mxu0 %v176
  %v407 = vpop.f32.mrb[0].mxu0
  %v408 = vadd.f32 0.0, %v407
  %v409 = vpop.f32.mrb[0].mxu0
  %410 = vmatprep.mubr.f32.mxu0 0.0
  %411 = vmatmul.mubr.f32.gmra.mrb[0].mxu0 %v179
  %v412 = vpop.f32.mrb[0].mxu0
  %v413 = vadd.f32 0.0, %v412
  %v414 = vpop.f32.mrb[0].mxu0
  %415 = vmatprep.mubr.f32.mxu0 0.0
  %416 = vmatmul.mubr.f32.gmra.mrb[0].mxu0 %v182
  %v417 = vpop.f32.mrb[0].mxu0
  %v418 = vadd.f32 0.0, %v417
  %v419 = vpop.f32.mrb[0].mxu0
  %420 = vmatprep.mubr.f32.mxu0 0.0
  %421 = vmatmul.mubr.f32.gmra.mrb[0].mxu0 %v185
  %v422 = vpop.f32.mrb[0].mxu0
  %v423 = vadd.f32 0.0, %v422
  %v424 = vpop.f32.mrb[0].mxu0
  %425 = vmatprep.mubr.f32.mxu0 0.0
  %426 = vmatmul.mubr.f32.gmra.mrb[0].mxu0 %v188
  %v427 = vpop.f32.mrb[0].mxu0
  %v428 = vadd.f32 0.0, %v427
  %v429 = vpop.f32.mrb[0].mxu0
  %430 = vmatprep.mubr.f32.mxu0 0.0
  %431 = vmatmul.mubr.f32.gmra.mrb[0].mxu0 %v191
  %v432 = vpop.f32.mrb[0].mxu0
  %v433 = vadd.f32 0.0, %v432
  %v434 = vpop.f32.mrb[0].mxu0
  %435 = vmatprep.mubr.f32.mxu0 0.0
  %436 = vmatmul.mubr.f32.gmra.mrb[0].mxu0 %v194
  %v437 = vpop.f32.mrb[0].mxu0
  %v438 = vadd.f32 0.0, %v437
  %v439 = vpop.f32.mrb[0].mxu0
  %440 = vmatprep.mubr.f32.mxu0 0.0
  %441 = vmatmul.mubr.f32.gmra.mrb[0].mxu0 %v197
  %v442 = vpop.f32.mrb[0].mxu0
  %v443 = vadd.f32 0.0, %v442
  %v444 = vpop.f32.mrb[0].mxu0
  %445 = vmatprep.mubr.f32.mxu0 0.0
  %446 = vmatmul.mubr.f32.gmra.mrb[0].mxu0 %v200
  %v447 = vpop.f32.mrb[0].mxu0
  %v448 = vadd.f32 0.0, %v447
  %v449 = vpop.f32.mrb[0].mxu0
  %450 = vmatprep.mubr.f32.mxu0 0.0
  %451 = vmatmul.mubr.f32.gmra.mrb[0].mxu0 %v203
  %v452 = vpop.f32.mrb[0].mxu0
  %v453 = vadd.f32 0.0, %v452
  %v454 = vpop.f32.mrb[0].mxu0
  %455 = vmatprep.mubr.f32.mxu0 0.0
  %456 = vmatmul.mubr.f32.gmra.mrb[0].mxu0 %v206
  %v457 = vpop.f32.mrb[0].mxu0
  %v458 = vadd.f32 0.0, %v457
  %v459 = vpop.f32.mrb[0].mxu0
  %460 = vmatprep.mubr.f32.mxu0 0.0
  %461 = vmatmul.mubr.f32.gmra.mrb[0].mxu0 %v209
  %v462 = vpop.f32.mrb[0].mxu0
  %v463 = vadd.f32 0.0, %v462
  %v464 = vpop.f32.mrb[0].mxu0
  %465 = vmatprep.mubr.f32.mxu0 0.0
  %466 = vmatmul.mubr.f32.gmra.mrb[0].mxu0 %v212
  %v467 = vpop.f32.mrb[0].mxu0
  %v468 = vadd.f32 0.0, %v467
  %v469 = vpop.f32.mrb[0].mxu0
  %470 = vmatprep.mubr.f32.mxu0 0.0
  %471 = vmatmul.mubr.f32.gmra.mrb[0].mxu0 %v215
  %v472 = vpop.f32.mrb[0].mxu0
  %v473 = vadd.f32 0.0, %v472
  %v474 = vpop.f32.mrb[0].mxu0
  %475 = vmatprep.mubr.f32.mxu0 0.0
  %476 = vmatmul.mubr.f32.gmra.mrb[0].mxu0 %v218
  %v477 = vpop.f32.mrb[0].mxu0
  %v478 = vadd.f32 0.0, %v477
  %v479 = vpop.f32.mrb[0].mxu0
  %480 = vmatprep.mubr.f32.mxu0 0.0
  %481 = vmatmul.mubr.f32.gmra.mrb[0].mxu0 %v221
  %v482 = vpop.f32.mrb[0].mxu0
  %v483 = vadd.f32 0.0, %v482
  %v484 = vpop.f32.mrb[0].mxu0
  %485 = vmatprep.mubr.f32.mxu0 0.0
  %486 = vmatmul.mubr.f32.gmra.mrb[0].mxu0 %v224
  %v487 = vpop.f32.mrb[0].mxu0
  %v488 = vadd.f32 0.0, %v487
  %v489 = vpop.f32.mrb[0].mxu0
  %490 = vmatprep.mubr.f32.mxu0 0.0
  %491 = vmatmul.mubr.f32.gmra.mrb[0].mxu0 %v227
  %v492 = vpop.f32.mrb[0].mxu0
  %v493 = vadd.f32 0.0, %v492
  %v494 = vpop.f32.mrb[0].mxu0
  %495 = vmatprep.mubr.f32.mxu0 0.0
  %496 = vmatmul.mubr.f32.gmra.mrb[0].mxu0 %v230
  %v497 = vpop.f32.mrb[0].mxu0
  %v498 = vadd.f32 0.0, %v497
  %v499 = vpop.f32.mrb[0].mxu0
  %500 = vmatprep.mubr.f32.mxu0 0.0
  %501 = vmatmul.mubr.f32.gmra.mrb[0].mxu0 %v233
  %v502 = vpop.f32.mrb[0].mxu0
  %v503 = vadd.f32 0.0, %v502
  %v504 = vpop.f32.mrb[0].mxu0
  %505 = vmatprep.mubr.f32.mxu0 0.0
  %506 = vmatmul.mubr.f32.gmra.mrb[0].mxu0 %v236
  %v507 = vpop.f32.mrb[0].mxu0
  %v508 = vadd.f32 0.0, %v507
  %v509 = vpop.f32.mrb[0].mxu0
  %510 = vmatprep.mubr.f32.mxu0 0.0
  %511 = vmatmul.mubr.f32.gmra.mrb[0].mxu0 %v239
  %v512 = vpop.f32.mrb[0].mxu0
  %v513 = vadd.f32 0.0, %v512
  %v514 = vpop.f32.mrb[0].mxu0
  %515 = vmatprep.mubr.f32.mxu0 0.0
  %516 = vmatmul.mubr.f32.gmra.mrb[0].mxu0 %v242
  %v517 = vpop.f32.mrb[0].mxu0
  %v518 = vadd.f32 0.0, %v517
  %v519 = vpop.f32.mrb[0].mxu0
  %520 = vmatprep.mubr.f32.mxu0 0.0
  %521 = vmatmul.mubr.f32.gmra.mrb[0].mxu0 %v245
  %v522 = vpop.f32.mrb[0].mxu0
  %v523 = vadd.f32 0.0, %v522
  %v524 = vpop.f32.mrb[0].mxu0
  %525 = vmatprep.mubr.f32.mxu0 0.0
  %526 = vmatmul.mubr.f32.gmra.mrb[0].mxu0 %v248
  %v527 = vpop.f32.mrb[0].mxu0
  %v528 = vadd.f32 0.0, %v527
  %v529 = vpop.f32.mrb[0].mxu0
  %530 = vmatprep.mubr.f32.mxu0 0.0
  %531 = vmatmul.mubr.f32.gmra.mrb[0].mxu0 %v251
  %v532 = vpop.f32.mrb[0].mxu0
  %v533 = vadd.f32 0.0, %v532
  %v534 = vpop.f32.mrb[0].mxu0
  %535 = vmatprep.mubr.f32.mxu0 0.0
  %536 = vmatmul.mubr.f32.gmra.mrb[0].mxu0 %v254
  %v537 = vpop.f32.mrb[0].mxu0
  %v538 = vadd.f32 0.0, %v537
  %v539 = vpop.f32.mrb[0].mxu0
  %540 = vmatprep.mubr.f32.mxu0 0.0
  %541 = vmatmul.mubr.f32.gmra.mrb[0].mxu0 %v257
  %v542 = vpop.f32.mrb[0].mxu0
  %v543 = vadd.f32 0.0, %v542
  %v544 = vpop.f32.mrb[0].mxu0
  %545 = vmatprep.mubr.f32.mxu0 0.0
  %546 = vmatmul.mubr.f32.gmra.mrb[0].mxu0 %v260
  %v547 = vpop.f32.mrb[0].mxu0
  %v548 = vadd.f32 0.0, %v547
  %v549 = vpop.f32.mrb[0].mxu0
  %550 = vmatprep.mubr.f32.mxu0 0.0
  %551 = vmatmul.mubr.f32.gmra.mrb[0].mxu0 %v263
  %v552 = vpop.f32.mrb[0].mxu0
  %v553 = vadd.f32 0.0, %v552
  %v554 = vpop.f32.mrb[0].mxu0
  %555 = vmatprep.mubr.f32.mxu0 0.0
  %556 = vmatmul.mubr.f32.gmra.mrb[0].mxu0 %v266
  %v557 = vpop.f32.mrb[0].mxu0
  %v558 = vadd.f32 0.0, %v557
  %v559 = vpop.f32.mrb[0].mxu0
  %560 = vmatprep.mubr.f32.mxu0 0.0
  %561 = vmatmul.mubr.f32.gmra.mrb[0].mxu0 %v269
  %v562 = vpop.f32.mrb[0].mxu0
  %v563 = vadd.f32 0.0, %v562
  %v564 = vpop.f32.mrb[0].mxu0
  %565 = vmatprep.mubr.f32.mxu0 0.0
  %566 = vmatmul.mubr.f32.gmra.mrb[0].mxu0 %v272
  %v567 = vpop.f32.mrb[0].mxu0
  %v568 = vadd.f32 0.0, %v567
  %v569 = vpop.f32.mrb[0].mxu0
  %570 = vmatprep.mubr.f32.mxu0 0.0
  %571 = vmatmul.mubr.f32.gmra.mrb[0].mxu0 %v275
  %v572 = vpop.f32.mrb[0].mxu0
  %v573 = vadd.f32 0.0, %v572
  %v574 = vpop.f32.mrb[0].mxu0
  %575 = vmatprep.mubr.f32.mxu0 0.0
  %576 = vmatmul.mubr.f32.gmra.mrb[0].mxu0 %v278
  %v577 = vpop.f32.mrb[0].mxu0
  %v578 = vadd.f32 0.0, %v577
  %v579 = vpop.f32.mrb[0].mxu0
  %580 = vmatprep.mubr.f32.mxu0 0.0
  %581 = vmatmul.mubr.f32.gmra.mrb[0].mxu0 %v281
  %v582 = vpop.f32.mrb[0].mxu0
  %v583 = vadd.f32 0.0, %v582
  %v584 = vpop.f32.mrb[0].mxu0
  %585 = vmatprep.mubr.f32.mxu0 0.0
  %586 = vmatmul.mubr.f32.gmra.mrb[0].mxu0 %v284
  %v587 = vpop.f32.mrb[0].mxu0
  %v588 = vadd.f32 0.0, %v587
  %v589 = vpop.f32.mrb[0].mxu0
  %590 = vdwg.mxu0
  %591 = vxpose.xlu0.b32.start [1/16] %v353, 128
  %592 = vxpose.xlu0.b32.cont [2/16] %v358, 128
  %593 = vxpose.xlu0.b32.cont [3/16] %v363, 128
  %594 = vxpose.xlu0.b32.cont [4/16] %v368, 128
  %595 = vxpose.xlu0.b32.cont [5/16] %v373, 128
  %596 = vxpose.xlu0.b32.cont [6/16] %v378, 128
  %597 = vxpose.xlu0.b32.cont [7/16] %v383, 128
  %598 = vxpose.xlu0.b32.cont [8/16] %v388, 128
  %599 = vxpose.xlu0.b32.cont [9/16] %v393, 128
  %600 = vxpose.xlu0.b32.cont [10/16] %v398, 128
  %601 = vxpose.xlu0.b32.cont [11/16] %v403, 128
  %602 = vxpose.xlu0.b32.cont [12/16] %v408, 128
  %603 = vxpose.xlu0.b32.cont [13/16] %v413, 128
  %604 = vxpose.xlu0.b32.cont [14/16] %v418, 128
  %605 = vxpose.xlu0.b32.cont [15/16] %v423, 128
  %606 = vxpose.xlu0.b32.end [16/16] %v428, 128
  %v607 = vpop.trf.xlu0
  %v608 = vpop.trf.xlu0
  %v609 = vpop.trf.xlu0
  %v610 = vpop.trf.xlu0
  %v611 = vpop.trf.xlu0
  %v612 = vpop.trf.xlu0
  %v613 = vpop.trf.xlu0
  %v614 = vpop.trf.xlu0
  %v615 = vpop.trf.xlu0
  %v616 = vpop.trf.xlu0
  %v617 = vpop.trf.xlu0
  %v618 = vpop.trf.xlu0
  %v619 = vpop.trf.xlu0
  %v620 = vpop.trf.xlu0
  %v621 = vpop.trf.xlu0
  %v622 = vpop.trf.xlu0
  %623 = vxpose.xlu0.b32.start [1/16] %v433, 128
  %624 = vxpose.xlu0.b32.cont [2/16] %v438, 128
  %625 = vxpose.xlu0.b32.cont [3/16] %v443, 128
  %626 = vxpose.xlu0.b32.cont [4/16] %v448, 128
  %627 = vxpose.xlu0.b32.cont [5/16] %v453, 128
  %628 = vxpose.xlu0.b32.cont [6/16] %v458, 128
  %629 = vxpose.xlu0.b32.cont [7/16] %v463, 128
  %630 = vxpose.xlu0.b32.cont [8/16] %v468, 128
  %631 = vxpose.xlu0.b32.cont [9/16] %v473, 128
  %632 = vxpose.xlu0.b32.cont [10/16] %v478, 128
  %633 = vxpose.xlu0.b32.cont [11/16] %v483, 128
  %634 = vxpose.xlu0.b32.cont [12/16] %v488, 128
  %635 = vxpose.xlu0.b32.cont [13/16] %v493, 128
  %636 = vxpose.xlu0.b32.cont [14/16] %v498, 128
  %637 = vxpose.xlu0.b32.cont [15/16] %v503, 128
  %638 = vxpose.xlu0.b32.end [16/16] %v508, 128
  %v639 = vpop.trf.xlu0
  %v640 = vpop.trf.xlu0
  %v641 = vpop.trf.xlu0
  %v642 = vpop.trf.xlu0
  %v643 = vpop.trf.xlu0
  %v644 = vpop.trf.xlu0
  %v645 = vpop.trf.xlu0
  %v646 = vpop.trf.xlu0
  %v647 = vpop.trf.xlu0
  %v648 = vpop.trf.xlu0
  %v649 = vpop.trf.xlu0
  %v650 = vpop.trf.xlu0
  %v651 = vpop.trf.xlu0
  %v652 = vpop.trf.xlu0
  %v653 = vpop.trf.xlu0
  %v654 = vpop.trf.xlu0
  %655 = vxpose.xlu0.b32.start [1/16] %v513, 128
  %656 = vxpose.xlu0.b32.cont [2/16] %v518, 128
  %657 = vxpose.xlu0.b32.cont [3/16] %v523, 128
  %658 = vxpose.xlu0.b32.cont [4/16] %v528, 128
  %659 = vxpose.xlu0.b32.cont [5/16] %v533, 128
  %660 = vxpose.xlu0.b32.cont [6/16] %v538, 128
  %661 = vxpose.xlu0.b32.cont [7/16] %v543, 128
  %662 = vxpose.xlu0.b32.cont [8/16] %v548, 128
  %663 = vxpose.xlu0.b32.cont [9/16] %v553, 128
  %664 = vxpose.xlu0.b32.cont [10/16] %v558, 128
  %665 = vxpose.xlu0.b32.cont [11/16] %v563, 128
  %666 = vxpose.xlu0.b32.cont [12/16] %v568, 128
  %667 = vxpose.xlu0.b32.cont [13/16] %v573, 128
  %668 = vxpose.xlu0.b32.cont [14/16] %v578, 128
  %669 = vxpose.xlu0.b32.cont [15/16] %v583, 128
  %670 = vxpose.xlu0.b32.end [16/16] %v588, 128
  %v671 = vpop.trf.xlu0
  %v672 = vpop.trf.xlu0
  %v673 = vpop.trf.xlu0
  %v674 = vpop.trf.xlu0
  %v675 = vpop.trf.xlu0
  %v676 = vpop.trf.xlu0
  %v677 = vpop.trf.xlu0
  %v678 = vpop.trf.xlu0
  %v679 = vpop.trf.xlu0
  %v680 = vpop.trf.xlu0
  %v681 = vpop.trf.xlu0
  %v682 = vpop.trf.xlu0
  %v683 = vpop.trf.xlu0
  %v684 = vpop.trf.xlu0
  %v685 = vpop.trf.xlu0
  %v686 = vpop.trf.xlu0
  %v687 = vmax.f32 %v607, 0.0
  %v688 = vmax.f32 %v639, 0.0
  %v689 = vmax.f32 %v671, 0.0
  %vm690 = vcmp.ne.f32.partialorder %v607, %v607
  %vm691 = vcmp.ne.f32.partialorder %v639, %v639
  %vm692 = vcmp.ne.f32.partialorder %v671, %v671
  %v693 = vadd.f32 %v607, 0.0
  %v694 = vadd.f32 %v639, 0.0
  %v695 = vadd.f32 %v671, 0.0
  %v696 = vand.u32 2147483647, %v607
  %v697 = vand.u32 2147483647, %v639
  %v698 = vand.u32 2147483647, %v671
  %v699 = vsub.f32 0.0, %v696
  %v700 = vsub.f32 0.0, %v697
  %v701 = vsub.f32 0.0, %v698
  %v702 = vmul.f32 %v699, 1.442695
  %v703 = vpow.pop %v702
  %v704 = vmul.f32 %v700, 1.442695
  %v705 = vpow.pop %v704
  %v706 = vmul.f32 %v701, 1.442695
  %v707 = vpow.pop %v706
  %v708 = vadd.f32 %v703, 1.0
  %v709 = vlog2.pop %v708
  %v710 = vmul.f32 %v709, 0.6931472
  %v711 = vmul.f32 -0.5, %v703
  %v712 = vadd.f32 %v711, 1.0
  %v713 = vmul.f32 %v712, %v703
  %v714 = vand.u32 2147483647, %v703
  %vm715 = vcmp.lt.f32.partialorder %v714, 0.0004427343
  %v716 = vsel %vm715, %v713, %v710
  %v717 = vadd.f32 %v705, 1.0
  %v718 = vlog2.pop %v717
  %v719 = vmul.f32 %v718, 0.6931472
  %v720 = vmul.f32 -0.5, %v705
  %v721 = vadd.f32 %v720, 1.0
  %v722 = vmul.f32 %v721, %v705
  %v723 = vand.u32 2147483647, %v705
  %vm724 = vcmp.lt.f32.partialorder %v723, 0.0004427343
  %v725 = vsel %vm724, %v722, %v719
  %v726 = vadd.f32 %v707, 1.0
  %v727 = vlog2.pop %v726
  %v728 = vmul.f32 %v727, 0.6931472
  %v729 = vmul.f32 -0.5, %v707
  %v730 = vadd.f32 %v729, 1.0
  %v731 = vmul.f32 %v730, %v707
  %v732 = vand.u32 2147483647, %v707
  %vm733 = vcmp.lt.f32.partialorder %v732, 0.0004427343
  %v734 = vsel %vm733, %v731, %v728
  %v735 = vadd.f32 %v687, %v716
  %v736 = vadd.f32 %v688, %v725
  %v737 = vadd.f32 %v689, %v734
  %v738 = vsel %vm690, %v693, %v735
  %v739 = vsel %vm691, %v694, %v736
  %v740 = vsel %vm692, %v695, %v737
  %v741 = vld [vmem:[%s75] sm:$0xff]
  %v742 = vld [vmem:[%s75 + $0x8] sm:$0xff]
  %v743 = vld [vmem:[%s75 + $0x10] sm:$0xff]
  %v744 = vlaneseq
  %v745 = vshrl.u32 %v744, 7
  %v746 = vsub.s32 1, %v745
  %v747 = vrot.slane %v738, %v746
  %v748 = vlaneseq
  %v749 = vshrl.u32 %v748, 7
  %v750 = vsub.s32 1, %v749
  %v751 = vrot.slane %v739, %v750
  %v752 = vlaneseq
  %v753 = vshrl.u32 %v752, 7
  %v754 = vsub.s32 1, %v753
  %v755 = vrot.slane %v740, %v754
  %v756 = vmul.f32 %v747, %v741
  %v757 = vmul.f32 %v751, %v742
  %v758 = vmul.f32 %v755, %v743
  %v759 = vlaneseq
  %v760 = vshrl.u32 %v759, 7
  %v761 = vsub.s32 0, %v760
  %v762 = vrot.slane %v607, %v761
  %v763 = vlaneseq
  %v764 = vshrl.u32 %v763, 7
  %v765 = vsub.s32 0, %v764
  %v766 = vrot.slane %v639, %v765
  %v767 = vlaneseq
  %v768 = vshrl.u32 %v767, 7
  %v769 = vsub.s32 0, %v768
  %v770 = vrot.slane %v671, %v769
  %v771 = vadd.f32 %v762, %v756
  %v772 = vadd.f32 %v766, %v757
  %v773 = vadd.f32 %v770, %v758
  %v774 = vlaneseq
  %v775 = vand.u32 %v774, 127
  %v776 = vadd.s32 %v775, 128
  %v777 = vadd.s32 %v775, 256
  %v778 = vmax.f32 %v771, %v772
  %v779 = vmax.f32 %v778, %v773
  %780 = vmax.xlane.f32.xlu0 %v779
  %v781 = vpop.xlane.xlu0 %780
  %vm782 = vcmp.eq.f32.partialorder %v771, %v781
  %vm783 = vcmp.eq.f32.partialorder %v772, %v781
  %vm784 = vcmp.eq.f32.partialorder %v773, %v781
  %v785 = vsel %vm782, %v775, 384
  %v786 = vsel %vm783, %v776, 384
  %v787 = vsel %vm784, %v777, 384
  %vm788 = vcmp.lt.s32.totalorder %v785, %v786
  %v789 = vsel %vm788, %v785, %v786
  %vm790 = vcmp.lt.s32.totalorder %v789, %v787
  %v791 = vsel %vm790, %v789, %v787
  %v792 = vand.u32 %v791, 65535
  %v793 = vshra.s32 %v791, 16
  %v794 = vcvt.s32.f32 %v792
  %v795 = vcvt.s32.f32 %v793
  %796 = vmin.xlane.f32.xlu0 %v795
  %v797 = vpop.xlane.xlu0 %796
  %vm798 = vcmp.eq.f32.partialorder %v795, %v797
  %v799 = vsel %vm798, %v794, inf
  %800 = vmin.xlane.f32.xlu0 %v799
  %v801 = vpop.xlane.xlu0 %800
  %v802 = vcvt.f32.s32 %v801
  %v803 = vcvt.f32.s32 %v797
  %v804 = vshll.u32 %v803, 16
  %v805 = vadd.s32 %v804, %v802
  %v806 = vstv %s136
  %v807 = vadd.s32 %v805, %v806
  %v808 = vld [vmem:[#allocation2] sm:$0xff]
  %vm809 = vcmp.gt.f32.partialorder %v781, %v808
  %v810 = vsel %vm809, %v781, %v808
  %vm811 = vcmask 7168
  %812 = vst.msk [vmem:[#allocation2] sm:$0xff] %vm811, %v810
  %v813 = vld [vmem:[#allocation3] sm:$0xff]
  %v814 = vsel %vm809, %v807, %v813
  %815 = vst.msk [vmem:[#allocation3] sm:$0xff] %vm811, %v814
  // Predicated region
  $region18: #{tpu_custom_call.1} parent=0 // pred_check
    %p816 = pneg %p80
  $region19: #{tpu_custom_call.1} parent=0 // pred_check_branch
    %818 = sbr.rel (%p816) target = $region21
  $region20: #{tpu_custom_call.1} parent=0 // pred_region
    %v819 = vld [vmem:[#allocation2] sm:$0xff]
    %820 = vst.msk [vmem:[%s3] sm:$0xff] %vm811, %v819
    %v821 = vld [vmem:[#allocation3] sm:$0xff]
    %822 = vst.msk [vmem:[%s4] sm:$0xff] %vm811, %v821
  $region21: #{tpu_custom_call.1} parent=0 // pred_fallthru
    _
  // Predicated region
  $region22: #{tpu_custom_call.1} parent=0 // pred_check
    _
  $region23: #{tpu_custom_call.1} parent=0 // pred_check_branch
    %824 = sbr.rel (0) target = $region25
  $region24: #{tpu_custom_call.1} parent=0 // pred_region
    _
  $region25: #{tpu_custom_call.1} parent=0 // pred_fallthru
    _
  // Predicated region
  $region26: #{tpu_custom_call.1} parent=0 // pred_check
    _
  $region27: #{tpu_custom_call.1} parent=0 // pred_check_branch
    %826 = sbr.rel (0) target = $region29
  $region28: #{tpu_custom_call.1} parent=0 // pred_region
    _
  $region29: #{tpu_custom_call.1} parent=0 // pred_fallthru
    _
  // Predicated region
  $region30: #{tpu_custom_call.1} parent=0 // pred_check
    _
  $region31: #{tpu_custom_call.1} parent=0 // pred_check_branch
    %828 = sbr.rel (0) target = $region33
  $region32: #{tpu_custom_call.1} parent=0 // pred_region
    _
  $region33: #{tpu_custom_call.1} parent=0 // pred_fallthru
    _
  // Predicated region
  $region34: #{tpu_custom_call.1} parent=0 // pred_check
    _
  $region35: #{tpu_custom_call.1} parent=0 // pred_check_branch
    %830 = sbr.rel (0) target = $region37
  $region36: #{tpu_custom_call.1} parent=0 // pred_region
    _
  $region37: #{tpu_custom_call.1} parent=0 // pred_fallthru
    _

</llo_original>
